<compile_context>
chip_gen: v7x
topology: tpu7x:2x2x1
jax: 0.10.0
libtpu: 0.0.40
codegen_flags: <defaults>
</compile_context>

<pallas_src>
import functools

import jax
import jax.numpy as jnp
from jax.experimental import pallas as pl
from jax.experimental.pallas import tpu as pltpu


def _round_up(n, m):
    return ((n + m - 1) // m) * m


def mlp_kernel(x_ref, a_ref,
               w1_ref, b1_ref,
               w2_ref, b2_ref,
               w3_ref, b3_ref,
               w4_ref, b4_ref,
               wo_ref, bo_ref,
               out_ref):
    x = x_ref[...]        # [TB, 2] f32
    alpha = a_ref[...]    # [TB, 1] f32
    w1 = w1_ref[...]      # [3, 64] f32

    # Layer 1 on the VPU: fused "concat + K=3 matmul" as broadcast mul-adds.
    h = (x[:, 0:1] * w1[0:1, :]
         + x[:, 1:2] * w1[1:2, :]
         + alpha * w1[2:3, :]
         + b1_ref[...])
    h = jnp.maximum(h, 0.0)                       # [TB, 64] f32

    def dense_relu(h, w_ref, b_ref):
        # bf16 operands on the MXU, f32 accumulate; bias/ReLU in f32.
        y = jnp.dot(h.astype(jnp.bfloat16), w_ref[...],
                    preferred_element_type=jnp.float32) + b_ref[...]
        return jnp.maximum(y, 0.0)

    h = dense_relu(h, w2_ref, b2_ref)
    h = dense_relu(h, w3_ref, b3_ref)
    h = dense_relu(h, w4_ref, b4_ref)

    # Output layer: no ReLU.
    y = jnp.dot(h.astype(jnp.bfloat16), wo_ref[...],
                preferred_element_type=jnp.float32) + bo_ref[...]
    out_ref[...] = y.astype(out_ref.dtype)        # [TB, 2] (narrow store: 8 B/row)


def init_linear(key, in_features, out_features):
    """PyTorch-style Linear init (uniform +/- 1/sqrt(fan_in)).
    Returns W transposed to [in, out] and bias [1, out]."""
    kw, kb = jax.random.split(key)
    bound = 1.0 / jnp.sqrt(jnp.float32(in_features))
    w = jax.random.uniform(kw, (out_features, in_features), jnp.float32, -bound, bound)
    b = jax.random.uniform(kb, (out_features,), jnp.float32, -bound, bound)
    return w.T, b.reshape(1, out_features)


def make_params(key):
    keys = jax.random.split(key, 5)
    w1, b1 = init_linear(keys[0], 3, 64)
    w2, b2 = init_linear(keys[1], 64, 64)
    w3, b3 = init_linear(keys[2], 64, 64)
    w4, b4 = init_linear(keys[3], 64, 64)
    wo, bo = init_linear(keys[4], 64, 2)
    return (w1, b1, w2, b2, w3, b3, w4, b4, wo, bo)


@functools.partial(jax.jit, static_argnames=("block_b",))
def nn_forward(x, alpha, params, *, block_b=1024):
    (w1, b1, w2, b2, w3, b3, w4, b4, wo, bo) = params
    B = x.shape[0]

    # Batch tile: multiple of 8 (f32 sublane), capped at block_b; pad the tail.
    TB = min(block_b, _round_up(B, 8))
    Bp = _round_up(B, TB)
    if Bp != B:
        x = jnp.pad(x, ((0, Bp - B), (0, 0)))
        alpha = jnp.pad(alpha, ((0, Bp - B), (0, 0)))

    # MXU operands in bf16 (cast once, outside the kernel); everything else f32.
    w2b = w2.astype(jnp.bfloat16)
    w3b = w3.astype(jnp.bfloat16)
    w4b = w4.astype(jnp.bfloat16)
    wob = wo.astype(jnp.bfloat16)

    grid = (Bp // TB,)

    def batch_spec(n):
        return pl.BlockSpec((TB, n), lambda i: (i, 0))

    def const_spec(a):
        return pl.BlockSpec(a.shape, lambda i: (0, 0))

    in_specs = [
        batch_spec(2),      # x
        batch_spec(1),      # alpha
        const_spec(w1), const_spec(b1),
        const_spec(w2b), const_spec(b2),
        const_spec(w3b), const_spec(b3),
        const_spec(w4b), const_spec(b4),
        const_spec(wob), const_spec(bo),
    ]
    out_spec = pl.BlockSpec((TB, 2), lambda i: (i, 0))

    out = pl.pallas_call(
        mlp_kernel,
        out_shape=jax.ShapeDtypeStruct((Bp, 2), jnp.float32),
        grid_spec=pltpu.PrefetchScalarGridSpec(
            num_scalar_prefetch=0,
            grid=grid,
            in_specs=in_specs,
            out_specs=out_spec,
        ),
        compiler_params=pltpu.CompilerParams(
            dimension_semantics=("parallel",),
        ),
    )(x, alpha, w1, b1, w2b, b2, w3b, b3, w4b, b4, wob, bo)

    return out[:B]


def nn_reference(x, alpha, params):
    """Pure-JAX f32 reference matching the PyTorch module exactly."""
    (w1, b1, w2, b2, w3, b3, w4, b4, wo, bo) = params
    h = jnp.concatenate([x, alpha], axis=1)
    for w, b in ((w1, b1), (w2, b2), (w3, b3), (w4, b4)):
        h = jnp.maximum(h @ w + b, 0.0)
    return h @ wo + bo


if __name__ == "__main__":
    key = jax.random.PRNGKey(0)
    kp, kx, ka = jax.random.split(key, 3)

    params = make_params(kp)

    B = 32
    x = jax.random.normal(kx, (B, 2), jnp.float32)
    alpha = jax.random.uniform(ka, (B, 1), jnp.float32)

    out = nn_forward(x, alpha, params)
    out = jax.block_until_ready(out)

    ref = nn_reference(x, alpha, params)
    assert out.shape == (B, 2)
    # bf16 MXU operands -> ~1e-3-level deviation from the f32 reference.
    assert jnp.allclose(out, ref, atol=2e-2, rtol=2e-2), float(
        jnp.max(jnp.abs(out - ref)))

    print("KERNEL_OK")
</pallas_src>

<mosaic_0001>
module attributes {stable_mosaic.version = 11 : i64} {
  func.func @mlp_kernel(%arg0: i32, %arg1: memref<32x2xf32, #tpu.memory_space<vmem>>, %arg2: memref<32x1xf32, #tpu.memory_space<vmem>>, %arg3: memref<3x64xf32, #tpu.memory_space<vmem>>, %arg4: memref<1x64xf32, #tpu.memory_space<vmem>>, %arg5: memref<64x64xbf16, #tpu.memory_space<vmem>>, %arg6: memref<1x64xf32, #tpu.memory_space<vmem>>, %arg7: memref<64x64xbf16, #tpu.memory_space<vmem>>, %arg8: memref<1x64xf32, #tpu.memory_space<vmem>>, %arg9: memref<64x64xbf16, #tpu.memory_space<vmem>>, %arg10: memref<1x64xf32, #tpu.memory_space<vmem>>, %arg11: memref<64x2xbf16, #tpu.memory_space<vmem>>, %arg12: memref<1x2xf32, #tpu.memory_space<vmem>>, %arg13: memref<32x2xf32, #tpu.memory_space<vmem>>) attributes {dimension_semantics = [#tpu.dimension_semantics<parallel>], iteration_bounds = array<i64: 1>, scalar_prefetch = 0 : i64, scratch_operands = 0 : i64, tpu.core_type = #tpu.core_type<tc>, window_params = [{transform_indices = @transform_0, window_bounds = array<i64: 32, 2>}, {transform_indices = @transform_1, window_bounds = array<i64: 32, 1>}, {pipeline_mode = #tpu.pipeline_mode<synchronous>, transform_indices = @transform_2, window_bounds = array<i64: 3, 64>}, {pipeline_mode = #tpu.pipeline_mode<synchronous>, transform_indices = @transform_3, window_bounds = array<i64: 1, 64>}, {pipeline_mode = #tpu.pipeline_mode<synchronous>, transform_indices = @transform_4, window_bounds = array<i64: 64, 64>}, {pipeline_mode = #tpu.pipeline_mode<synchronous>, transform_indices = @transform_5, window_bounds = array<i64: 1, 64>}, {pipeline_mode = #tpu.pipeline_mode<synchronous>, transform_indices = @transform_6, window_bounds = array<i64: 64, 64>}, {pipeline_mode = #tpu.pipeline_mode<synchronous>, transform_indices = @transform_7, window_bounds = array<i64: 1, 64>}, {pipeline_mode = #tpu.pipeline_mode<synchronous>, transform_indices = @transform_8, window_bounds = array<i64: 64, 64>}, {pipeline_mode = #tpu.pipeline_mode<synchronous>, transform_indices = @transform_9, window_bounds = array<i64: 1, 64>}, {pipeline_mode = #tpu.pipeline_mode<synchronous>, transform_indices = @transform_10, window_bounds = array<i64: 64, 2>}, {pipeline_mode = #tpu.pipeline_mode<synchronous>, transform_indices = @transform_11, window_bounds = array<i64: 1, 2>}, {transform_indices = @transform_12, window_bounds = array<i64: 32, 2>}]} {
    %c0 = arith.constant 0 : index
    %c0_0 = arith.constant 0 : index
    %0 = vector.load %arg1[%c0, %c0_0] : memref<32x2xf32, #tpu.memory_space<vmem>>, vector<32x2xf32>
    %c0_1 = arith.constant 0 : index
    %c0_2 = arith.constant 0 : index
    %1 = vector.load %arg2[%c0_1, %c0_2] : memref<32x1xf32, #tpu.memory_space<vmem>>, vector<32x1xf32>
    %c0_3 = arith.constant 0 : index
    %c0_4 = arith.constant 0 : index
    %2 = vector.load %arg3[%c0_3, %c0_4] : memref<3x64xf32, #tpu.memory_space<vmem>>, vector<3x64xf32>
    %3 = vector.extract_strided_slice %0 {offsets = [0, 0], sizes = [32, 1], strides = [1, 1]} : vector<32x2xf32> to vector<32x1xf32>
    %4 = vector.extract_strided_slice %2 {offsets = [0, 0], sizes = [1, 64], strides = [1, 1]} : vector<3x64xf32> to vector<1x64xf32>
    %5 = vector.broadcast %3 : vector<32x1xf32> to vector<32x64xf32>
    %6 = vector.broadcast %4 : vector<1x64xf32> to vector<32x64xf32>
    %7 = arith.mulf %5, %6 : vector<32x64xf32>
    %8 = vector.extract_strided_slice %0 {offsets = [0, 1], sizes = [32, 1], strides = [1, 1]} : vector<32x2xf32> to vector<32x1xf32>
    %9 = vector.extract_strided_slice %2 {offsets = [1, 0], sizes = [1, 64], strides = [1, 1]} : vector<3x64xf32> to vector<1x64xf32>
    %10 = vector.broadcast %8 : vector<32x1xf32> to vector<32x64xf32>
    %11 = vector.broadcast %9 : vector<1x64xf32> to vector<32x64xf32>
    %12 = arith.mulf %10, %11 : vector<32x64xf32>
    %13 = arith.addf %7, %12 : vector<32x64xf32>
    %14 = vector.extract_strided_slice %2 {offsets = [2, 0], sizes = [1, 64], strides = [1, 1]} : vector<3x64xf32> to vector<1x64xf32>
    %15 = vector.broadcast %1 : vector<32x1xf32> to vector<32x64xf32>
    %16 = vector.broadcast %14 : vector<1x64xf32> to vector<32x64xf32>
    %17 = arith.mulf %15, %16 : vector<32x64xf32>
    %18 = arith.addf %13, %17 : vector<32x64xf32>
    %c0_5 = arith.constant 0 : index
    %c0_6 = arith.constant 0 : index
    %19 = vector.load %arg4[%c0_5, %c0_6] : memref<1x64xf32, #tpu.memory_space<vmem>>, vector<1x64xf32>
    %20 = vector.broadcast %19 : vector<1x64xf32> to vector<32x64xf32>
    %21 = arith.addf %18, %20 : vector<32x64xf32>
    %cst = arith.constant 0.000000e+00 : f32
    %22 = vector.broadcast %cst : f32 to vector<32x64xf32>
    %23 = arith.maximumf %21, %22 : vector<32x64xf32>
    %24 = arith.truncf %23 : vector<32x64xf32> to vector<32x64xbf16>
    %c0_7 = arith.constant 0 : index
    %c0_8 = arith.constant 0 : index
    %25 = vector.load %arg5[%c0_7, %c0_8] : memref<64x64xbf16, #tpu.memory_space<vmem>>, vector<64x64xbf16>
    %cst_9 = arith.constant dense<0.000000e+00> : vector<32x64xf32>
    %26 = tpu.matmul %24, %25, %cst_9 {dimension_numbers = #tpu.dot_dimension_numbers<[1], [0], [0], [1], [0, 0, 1, 1], [], []>} : vector<32x64xbf16>, vector<64x64xbf16>, vector<32x64xf32> -> vector<32x64xf32>
    %c0_10 = arith.constant 0 : index
    %c0_11 = arith.constant 0 : index
    %27 = vector.load %arg6[%c0_10, %c0_11] : memref<1x64xf32, #tpu.memory_space<vmem>>, vector<1x64xf32>
    %28 = vector.broadcast %27 : vector<1x64xf32> to vector<32x64xf32>
    %29 = arith.addf %26, %28 : vector<32x64xf32>
    %cst_12 = arith.constant 0.000000e+00 : f32
    %30 = vector.broadcast %cst_12 : f32 to vector<32x64xf32>
    %31 = arith.maximumf %29, %30 : vector<32x64xf32>
    %32 = arith.truncf %31 : vector<32x64xf32> to vector<32x64xbf16>
    %c0_13 = arith.constant 0 : index
    %c0_14 = arith.constant 0 : index
    %33 = vector.load %arg7[%c0_13, %c0_14] : memref<64x64xbf16, #tpu.memory_space<vmem>>, vector<64x64xbf16>
    %cst_15 = arith.constant dense<0.000000e+00> : vector<32x64xf32>
    %34 = tpu.matmul %32, %33, %cst_15 {dimension_numbers = #tpu.dot_dimension_numbers<[1], [0], [0], [1], [0, 0, 1, 1], [], []>} : vector<32x64xbf16>, vector<64x64xbf16>, vector<32x64xf32> -> vector<32x64xf32>
    %c0_16 = arith.constant 0 : index
    %c0_17 = arith.constant 0 : index
    %35 = vector.load %arg8[%c0_16, %c0_17] : memref<1x64xf32, #tpu.memory_space<vmem>>, vector<1x64xf32>
    %36 = vector.broadcast %35 : vector<1x64xf32> to vector<32x64xf32>
    %37 = arith.addf %34, %36 : vector<32x64xf32>
    %cst_18 = arith.constant 0.000000e+00 : f32
    %38 = vector.broadcast %cst_18 : f32 to vector<32x64xf32>
    %39 = arith.maximumf %37, %38 : vector<32x64xf32>
    %40 = arith.truncf %39 : vector<32x64xf32> to vector<32x64xbf16>
    %c0_19 = arith.constant 0 : index
    %c0_20 = arith.constant 0 : index
    %41 = vector.load %arg9[%c0_19, %c0_20] : memref<64x64xbf16, #tpu.memory_space<vmem>>, vector<64x64xbf16>
    %cst_21 = arith.constant dense<0.000000e+00> : vector<32x64xf32>
    %42 = tpu.matmul %40, %41, %cst_21 {dimension_numbers = #tpu.dot_dimension_numbers<[1], [0], [0], [1], [0, 0, 1, 1], [], []>} : vector<32x64xbf16>, vector<64x64xbf16>, vector<32x64xf32> -> vector<32x64xf32>
    %c0_22 = arith.constant 0 : index
    %c0_23 = arith.constant 0 : index
    %43 = vector.load %arg10[%c0_22, %c0_23] : memref<1x64xf32, #tpu.memory_space<vmem>>, vector<1x64xf32>
    %44 = vector.broadcast %43 : vector<1x64xf32> to vector<32x64xf32>
    %45 = arith.addf %42, %44 : vector<32x64xf32>
    %cst_24 = arith.constant 0.000000e+00 : f32
    %46 = vector.broadcast %cst_24 : f32 to vector<32x64xf32>
    %47 = arith.maximumf %45, %46 : vector<32x64xf32>
    %48 = arith.truncf %47 : vector<32x64xf32> to vector<32x64xbf16>
    %c0_25 = arith.constant 0 : index
    %c0_26 = arith.constant 0 : index
    %49 = vector.load %arg11[%c0_25, %c0_26] : memref<64x2xbf16, #tpu.memory_space<vmem>>, vector<64x2xbf16>
    %cst_27 = arith.constant dense<0.000000e+00> : vector<32x2xf32>
    %50 = tpu.matmul %48, %49, %cst_27 {dimension_numbers = #tpu.dot_dimension_numbers<[1], [0], [0], [1], [0, 0, 1, 1], [], []>} : vector<32x64xbf16>, vector<64x2xbf16>, vector<32x2xf32> -> vector<32x2xf32>
    %c0_28 = arith.constant 0 : index
    %c0_29 = arith.constant 0 : index
    %51 = vector.load %arg12[%c0_28, %c0_29] : memref<1x2xf32, #tpu.memory_space<vmem>>, vector<1x2xf32>
    %52 = vector.broadcast %51 : vector<1x2xf32> to vector<32x2xf32>
    %53 = arith.addf %50, %52 : vector<32x2xf32>
    %c0_30 = arith.constant 0 : index
    %c0_31 = arith.constant 0 : index
    %54 = vector.load %arg13[%c0_30, %c0_31] : memref<32x2xf32, #tpu.memory_space<vmem>>, vector<32x2xf32>
    tpu.vector_store %arg13[%c0_30, %c0_31], %53 {strides = array<i32>} : memref<32x2xf32, #tpu.memory_space<vmem>>, vector<32x2xf32>,
    return
  }
  func.func @transform_0(%arg0: i32) -> (i32, i32) {
    %c0_i32 = arith.constant 0 : i32
    %c0_i32_0 = arith.constant 0 : i32
    return %arg0, %c0_i32 : i32, i32
  }
  func.func @transform_1(%arg0: i32) -> (i32, i32) {
    %c0_i32 = arith.constant 0 : i32
    %c0_i32_0 = arith.constant 0 : i32
    return %arg0, %c0_i32 : i32, i32
  }
  func.func @transform_2(%arg0: i32) -> (i32, i32) {
    %c0_i32 = arith.constant 0 : i32
    %c0_i32_0 = arith.constant 0 : i32
    %c0_i32_1 = arith.constant 0 : i32
    return %c0_i32, %c0_i32_0 : i32, i32
  }
  func.func @transform_3(%arg0: i32) -> (i32, i32) {
    %c0_i32 = arith.constant 0 : i32
    %c0_i32_0 = arith.constant 0 : i32
    %c0_i32_1 = arith.constant 0 : i32
    return %c0_i32, %c0_i32_0 : i32, i32
  }
  func.func @transform_4(%arg0: i32) -> (i32, i32) {
    %c0_i32 = arith.constant 0 : i32
    %c0_i32_0 = arith.constant 0 : i32
    %c0_i32_1 = arith.constant 0 : i32
    return %c0_i32, %c0_i32_0 : i32, i32
  }
  func.func @transform_5(%arg0: i32) -> (i32, i32) {
    %c0_i32 = arith.constant 0 : i32
    %c0_i32_0 = arith.constant 0 : i32
    %c0_i32_1 = arith.constant 0 : i32
    return %c0_i32, %c0_i32_0 : i32, i32
  }
  func.func @transform_6(%arg0: i32) -> (i32, i32) {
    %c0_i32 = arith.constant 0 : i32
    %c0_i32_0 = arith.constant 0 : i32
    %c0_i32_1 = arith.constant 0 : i32
    return %c0_i32, %c0_i32_0 : i32, i32
  }
  func.func @transform_7(%arg0: i32) -> (i32, i32) {
    %c0_i32 = arith.constant 0 : i32
    %c0_i32_0 = arith.constant 0 : i32
    %c0_i32_1 = arith.constant 0 : i32
    return %c0_i32, %c0_i32_0 : i32, i32
  }
  func.func @transform_8(%arg0: i32) -> (i32, i32) {
    %c0_i32 = arith.constant 0 : i32
    %c0_i32_0 = arith.constant 0 : i32
    %c0_i32_1 = arith.constant 0 : i32
    return %c0_i32, %c0_i32_0 : i32, i32
  }
  func.func @transform_9(%arg0: i32) -> (i32, i32) {
    %c0_i32 = arith.constant 0 : i32
    %c0_i32_0 = arith.constant 0 : i32
    %c0_i32_1 = arith.constant 0 : i32
    return %c0_i32, %c0_i32_0 : i32, i32
  }
  func.func @transform_10(%arg0: i32) -> (i32, i32) {
    %c0_i32 = arith.constant 0 : i32
    %c0_i32_0 = arith.constant 0 : i32
    %c0_i32_1 = arith.constant 0 : i32
    return %c0_i32, %c0_i32_0 : i32, i32
  }
  func.func @transform_11(%arg0: i32) -> (i32, i32) {
    %c0_i32 = arith.constant 0 : i32
    %c0_i32_0 = arith.constant 0 : i32
    %c0_i32_1 = arith.constant 0 : i32
    return %c0_i32, %c0_i32_0 : i32, i32
  }
  func.func @transform_12(%arg0: i32) -> (i32, i32) {
    %c0_i32 = arith.constant 0 : i32
    %c0_i32_0 = arith.constant 0 : i32
    return %arg0, %c0_i32 : i32, i32
  }
}

</mosaic_0001>

<llo_original>
// kernel: nn_forward.1
$region0: #{nn_forward.1}
  #allocation0 [shape = 'u32[]', space=smem, size = 0x4, offset = 0x4, fixed_abs, tag = 'smem constant byte address 0x4 - core index']
  #allocation1 [shape = 'u32[144,128]{1,0:T(1,128)}', space=vmem, size = 0x12000, scoped, tag = 'internal scratch']
  %s0 = inlined_call_operand.vmem [shape: f32[32,2], index: 0, kind: input, shape index: {}]
  %s1 = inlined_call_operand.vmem [shape: f32[32,1], index: 1, kind: input, shape index: {}]
  %s2 = inlined_call_operand.vmem [shape: f32[3,64], index: 2, kind: input, shape index: {}]
  %s3 = inlined_call_operand.vmem [shape: f32[1,64], index: 3, kind: input, shape index: {}]
  %s4 = inlined_call_operand.vmem [shape: bf16[64,64], index: 4, kind: input, shape index: {}]
  %s5 = inlined_call_operand.vmem [shape: f32[1,64], index: 5, kind: input, shape index: {}]
  %s6 = inlined_call_operand.vmem [shape: bf16[64,64], index: 6, kind: input, shape index: {}]
  %s7 = inlined_call_operand.vmem [shape: f32[1,64], index: 7, kind: input, shape index: {}]
  %s8 = inlined_call_operand.vmem [shape: bf16[64,64], index: 8, kind: input, shape index: {}]
  %s9 = inlined_call_operand.vmem [shape: f32[1,64], index: 9, kind: input, shape index: {}]
  %s10 = inlined_call_operand.vmem [shape: bf16[64,2], index: 10, kind: input, shape index: {}]
  %s11 = inlined_call_operand.vmem [shape: f32[1,2], index: 11, kind: input, shape index: {}]
  %s12 = inlined_call_operand.vmem [shape: f32[32,2], index: 12, kind: output, shape index: {}]
  %s13 = sld [smem:[#allocation0]]
  $region58: #{nn_forward.1} parent=0
    _
  %s15 = ssub.s32 1, %s13
  %s16 = scalar_select 0, %s15, %s13
  // Predicated region
  $region2: #{nn_forward.1} parent=0 // pred_check
    _
  $region3: #{nn_forward.1} parent=0 // pred_check_branch
    %18 = sbr.rel (0) target = $region5
  $region4: #{nn_forward.1} parent=0 // pred_region
    _
  $region5: #{nn_forward.1} parent=0 // pred_fallthru
    _
  // Predicated region
  $region6: #{nn_forward.1} parent=0 // pred_check
    _
  $region7: #{nn_forward.1} parent=0 // pred_check_branch
    %20 = sbr.rel (0) target = $region9
  $region8: #{nn_forward.1} parent=0 // pred_region
    _
  $region9: #{nn_forward.1} parent=0 // pred_fallthru
    _
  // Predicated region
  $region10: #{nn_forward.1} parent=0 // pred_check
    _
  $region11: #{nn_forward.1} parent=0 // pred_check_branch
    %22 = sbr.rel (0) target = $region13
  $region12: #{nn_forward.1} parent=0 // pred_region
    _
  $region13: #{nn_forward.1} parent=0 // pred_fallthru
    _
  // Predicated region
  $region14: #{nn_forward.1} parent=0 // pred_check
    _
  $region15: #{nn_forward.1} parent=0 // pred_check_branch
    %24 = sbr.rel (0) target = $region17
  $region16: #{nn_forward.1} parent=0 // pred_region
    _
  $region17: #{nn_forward.1} parent=0 // pred_fallthru
    _
  // Predicated region
  $region18: #{nn_forward.1} parent=0 // pred_check
    _
  $region19: #{nn_forward.1} parent=0 // pred_check_branch
    %26 = sbr.rel (0) target = $region21
  $region20: #{nn_forward.1} parent=0 // pred_region
    _
  $region21: #{nn_forward.1} parent=0 // pred_fallthru
    _
  // Predicated region
  $region22: #{nn_forward.1} parent=0 // pred_check
    _
  $region23: #{nn_forward.1} parent=0 // pred_check_branch
    %28 = sbr.rel (0) target = $region25
  $region24: #{nn_forward.1} parent=0 // pred_region
    _
  $region25: #{nn_forward.1} parent=0 // pred_fallthru
    _
  // Predicated region
  $region26: #{nn_forward.1} parent=0 // pred_check
    _
  $region27: #{nn_forward.1} parent=0 // pred_check_branch
    %30 = sbr.rel (0) target = $region29
  $region28: #{nn_forward.1} parent=0 // pred_region
    _
  $region29: #{nn_forward.1} parent=0 // pred_fallthru
    _
  // Predicated region
  $region30: #{nn_forward.1} parent=0 // pred_check
    _
  $region31: #{nn_forward.1} parent=0 // pred_check_branch
    %32 = sbr.rel (0) target = $region33
  $region32: #{nn_forward.1} parent=0 // pred_region
    _
  $region33: #{nn_forward.1} parent=0 // pred_fallthru
    _
  // Predicated region
  $region34: #{nn_forward.1} parent=0 // pred_check
    _
  $region35: #{nn_forward.1} parent=0 // pred_check_branch
    %34 = sbr.rel (0) target = $region37
  $region36: #{nn_forward.1} parent=0 // pred_region
    _
  $region37: #{nn_forward.1} parent=0 // pred_fallthru
    _
  // Predicated region
  $region38: #{nn_forward.1} parent=0 // pred_check
    _
  $region39: #{nn_forward.1} parent=0 // pred_check_branch
    %36 = sbr.rel (0) target = $region41
  $region40: #{nn_forward.1} parent=0 // pred_region
    _
  $region41: #{nn_forward.1} parent=0 // pred_fallthru
    _
  // Predicated region
  $region42: #{nn_forward.1} parent=0 // pred_check
    _
  $region43: #{nn_forward.1} parent=0 // pred_check_branch
    %38 = sbr.rel (0) target = $region45
  $region44: #{nn_forward.1} parent=0 // pred_region
    _
  $region45: #{nn_forward.1} parent=0 // pred_fallthru
    _
  // Predicated region
  $region46: #{nn_forward.1} parent=0 // pred_check
    _
  $region47: #{nn_forward.1} parent=0 // pred_check_branch
    %40 = sbr.rel (0) target = $region49
  $region48: #{nn_forward.1} parent=0 // pred_region
    _
  $region49: #{nn_forward.1} parent=0 // pred_fallthru
    _
  %v42 = vld [vmem:[%s0] sm:$0xff]
  %v43 = vld [vmem:[%s0 + $0x8] sm:$0xff]
  %v44 = vld [vmem:[%s0 + $0x10] sm:$0xff]
  %v45 = vld [vmem:[%s0 + $0x18] sm:$0xff]
  %v46 = vld [vmem:[%s1] sm:$0xff]
  %v47 = vld [vmem:[%s1 + $0x8] sm:$0xff]
  %v48 = vld [vmem:[%s1 + $0x10] sm:$0xff]
  %v49 = vld [vmem:[%s1 + $0x18] sm:$0xff]
  %v50 = vld [vmem:[%s2] sm:$0x7]
  %52 = vset.pattern.permute.xlu0 0
  %53 = vperm.xlu0 %52, %v42
  %v54 = vpop.permute.xlu0 %53
  %57 = vset.pattern.permute.xlu0 0
  %58 = vperm.xlu0 %57, %v43
  %v59 = vpop.permute.xlu0 %58
  %62 = vset.pattern.permute.xlu0 0
  %63 = vperm.xlu0 %62, %v44
  %v64 = vpop.permute.xlu0 %63
  %67 = vset.pattern.permute.xlu0 0
  %68 = vperm.xlu0 %67, %v45
  %v69 = vpop.permute.xlu0 %68
  %v71 = vlaneseq
  %v72 = vshrl.u32 %v71, 7
  %v73 = vsub.s32 0, %v72
  %v74 = vrot.slane %v50, %v73
  %v75 = vmul.f32 %v54, %v74
  %v76 = vmul.f32 %v59, %v74
  %v77 = vmul.f32 %v64, %v74
  %v78 = vmul.f32 %v69, %v74
  %79 = vset.pattern.permute.xlu0 1
  %80 = vperm.xlu0 %79, %v42
  %v81 = vpop.permute.xlu0 %80
  %83 = vset.pattern.permute.xlu0 1
  %84 = vperm.xlu0 %83, %v43
  %v85 = vpop.permute.xlu0 %84
  %87 = vset.pattern.permute.xlu0 1
  %88 = vperm.xlu0 %87, %v44
  %v89 = vpop.permute.xlu0 %88
  %91 = vset.pattern.permute.xlu0 1
  %92 = vperm.xlu0 %91, %v45
  %v93 = vpop.permute.xlu0 %92
  %v95 = vlaneseq
  %v96 = vshrl.u32 %v95, 7
  %v97 = vsub.s32 1, %v96
  %v98 = vrot.slane %v50, %v97
  %v99 = vmul.f32 %v81, %v98
  %v100 = vmul.f32 %v85, %v98
  %v101 = vmul.f32 %v89, %v98
  %v102 = vmul.f32 %v93, %v98
  %v103 = vadd.f32 %v75, %v99
  %v104 = vadd.f32 %v76, %v100
  %v105 = vadd.f32 %v77, %v101
  %v106 = vadd.f32 %v78, %v102
  %108 = vset.pattern.permute.xlu0 0
  %109 = vperm.xlu0 %108, %v46
  %v110 = vpop.permute.xlu0 %109
  %113 = vset.pattern.permute.xlu0 0
  %114 = vperm.xlu0 %113, %v47
  %v115 = vpop.permute.xlu0 %114
  %118 = vset.pattern.permute.xlu0 0
  %119 = vperm.xlu0 %118, %v48
  %v120 = vpop.permute.xlu0 %119
  %123 = vset.pattern.permute.xlu0 0
  %124 = vperm.xlu0 %123, %v49
  %v125 = vpop.permute.xlu0 %124
  %v127 = vlaneseq
  %v128 = vshrl.u32 %v127, 7
  %v129 = vsub.s32 2, %v128
  %v130 = vrot.slane %v50, %v129
  %v131 = vmul.f32 %v110, %v130
  %v132 = vmul.f32 %v115, %v130
  %v133 = vmul.f32 %v120, %v130
  %v134 = vmul.f32 %v125, %v130
  %v135 = vadd.f32 %v103, %v131
  %v136 = vadd.f32 %v104, %v132
  %v137 = vadd.f32 %v105, %v133
  %v138 = vadd.f32 %v106, %v134
  %v139 = vld [vmem:[%s3] sm:$0x1]
  %v141 = vlaneseq
  %v142 = vshrl.u32 %v141, 7
  %v143 = vsub.s32 0, %v142
  %v144 = vrot.slane %v139, %v143
  %v146 = vadd.f32 %v135, %v144
  %v147 = vadd.f32 %v136, %v144
  %v148 = vadd.f32 %v137, %v144
  %v149 = vadd.f32 %v138, %v144
  %v150 = vmax.f32 %v146, 0.0
  %v151 = vmax.f32 %v147, 0.0
  %v152 = vmax.f32 %v148, 0.0
  %v153 = vmax.f32 %v149, 0.0
  %v154 = vpack.c.bf16 %v151, %v150
  %v155 = vpack.c.bf16 %v153, %v152
  %v156 = vld [vmem:[%s4] sm:$0xf]
  %v157 = vld [vmem:[%s4 + $0x4] sm:$0xf]
  %v158 = vld [vmem:[%s4 + $0x8] sm:$0xf]
  %v159 = vld [vmem:[%s4 + $0xc] sm:$0xf]
  %v160 = vld [vmem:[%s4 + $0x10] sm:$0xf]
  %v161 = vld [vmem:[%s4 + $0x14] sm:$0xf]
  %v162 = vld [vmem:[%s4 + $0x18] sm:$0xf]
  %v163 = vld [vmem:[%s4 + $0x1c] sm:$0xf]
  %v164 = vld [vmem:[%s5] sm:$0x1]
  %v166 = vlaneseq
  %v167 = vshrl.u32 %v166, 7
  %v168 = vsub.s32 0, %v167
  %v169 = vrot.slane %v164, %v168
  %v179 = vunpack.c.l.b16 %v156
  %v180 = vunpack.c.l.b16 %v157
  %v181 = vunpack.c.l.b16 %v158
  %v182 = vunpack.c.l.b16 %v159
  %v183 = vunpack.c.l.b16 %v160
  %v184 = vunpack.c.l.b16 %v161
  %v185 = vunpack.c.l.b16 %v162
  %v186 = vunpack.c.l.b16 %v163
  %v187 = vpack.c.b16 %v180, %v179
  %v188 = vpack.c.b16 %v182, %v181
  %v189 = vpack.c.b16 %v184, %v183
  %v190 = vpack.c.b16 %v186, %v185
  %vm195 = vcmask 523264
  %v197 = vsel %vm195, %v154, 0
  %v200 = vsel %vm195, %v155, 0
  %202 = vmatprep.subr.bf16.mxu0 0
  %203 = vmatpush1.bf16.msra.mxu0 %v187
  %204 = vmatprep.subr.bf16.mxu0 0
  %205 = vmatpush1.bf16.msra.mxu0 %v188
  %206 = vmatprep.subr.bf16.mxu0 0
  %207 = vmatpush1.bf16.msra.mxu0 %v189
  %208 = vmatprep.subr.bf16.mxu0 0
  %209 = vmatpush1.bf16.msra.mxu0 %v190
  %210 = vmatprep.subr.bf16.mxu0 0
  %211 = vmatpush1.bf16.msra.mxu0 0
  %212 = vmatprep.subr.bf16.mxu0 0
  %213 = vmatpush1.bf16.msra.mxu0 0
  %214 = vmatprep.subr.bf16.mxu0 0
  %215 = vmatpush1.bf16.msra.mxu0 0
  %216 = vmatprep.subr.bf16.mxu0 0
  %217 = vmatpush1.bf16.msra.mxu0 0
  %218 = vmatprep.subr.bf16.mxu0 0
  %219 = vmatpush1.bf16.msra.mxu0 0
  %220 = vmatprep.subr.bf16.mxu0 0
  %221 = vmatpush1.bf16.msra.mxu0 0
  %222 = vmatprep.subr.bf16.mxu0 0
  %223 = vmatpush1.bf16.msra.mxu0 0
  %224 = vmatprep.subr.bf16.mxu0 0
  %225 = vmatpush1.bf16.msra.mxu0 0
  %226 = vmatprep.subr.bf16.mxu0 0
  %227 = vmatpush1.bf16.msra.mxu0 0
  %228 = vmatprep.subr.bf16.mxu0 0
  %229 = vmatpush1.bf16.msra.mxu0 0
  %230 = vmatprep.subr.bf16.mxu0 0
  %231 = vmatpush1.bf16.msra.mxu0 0
  %232 = vmatprep.subr.bf16.mxu0 0
  %233 = vmatpush1.bf16.msra.mxu0 0
  %234 = vmatprep.mubr.bf16.mxu0 0
  %235 = vmatmul.mubr.bf16.gmra.mrb[0].mxu0 %v197
  %v236 = vpop.f32.mrb[0].mxu0
  %v237 = vadd.f32 %v169, %v236
  %v238 = vpop.f32.mrb[0].mxu0
  %v239 = vpop.f32.mrb[0].mxu0
  %v240 = vadd.f32 %v169, %v239
  %v241 = vpop.f32.mrb[0].mxu0
  %242 = vmatprep.mubr.bf16.mxu0 0
  %243 = vmatmul.mubr.bf16.gmra.mrb[0].mxu0 %v200
  %v244 = vpop.f32.mrb[0].mxu0
  %v245 = vadd.f32 %v169, %v244
  %v246 = vpop.f32.mrb[0].mxu0
  %v247 = vpop.f32.mrb[0].mxu0
  %v248 = vadd.f32 %v169, %v247
  %v249 = vpop.f32.mrb[0].mxu0
  %250 = vdwg.mxu0
  %v251 = vmax.f32 %v237, 0.0
  %v252 = vmax.f32 %v240, 0.0
  %v253 = vmax.f32 %v245, 0.0
  %v254 = vmax.f32 %v248, 0.0
  %v255 = vpack.c.bf16 %v252, %v251
  %v256 = vpack.c.bf16 %v254, %v253
  %v257 = vld [vmem:[%s6] sm:$0xf]
  %v258 = vld [vmem:[%s6 + $0x4] sm:$0xf]
  %v259 = vld [vmem:[%s6 + $0x8] sm:$0xf]
  %v260 = vld [vmem:[%s6 + $0xc] sm:$0xf]
  %v261 = vld [vmem:[%s6 + $0x10] sm:$0xf]
  %v262 = vld [vmem:[%s6 + $0x14] sm:$0xf]
  %v263 = vld [vmem:[%s6 + $0x18] sm:$0xf]
  %v264 = vld [vmem:[%s6 + $0x1c] sm:$0xf]
  %v265 = vld [vmem:[%s7] sm:$0x1]
  %v267 = vlaneseq
  %v268 = vshrl.u32 %v267, 7
  %v269 = vsub.s32 0, %v268
  %v270 = vrot.slane %v265, %v269
  %v280 = vunpack.c.l.b16 %v257
  %v281 = vunpack.c.l.b16 %v258
  %v282 = vunpack.c.l.b16 %v259
  %v283 = vunpack.c.l.b16 %v260
  %v284 = vunpack.c.l.b16 %v261
  %v285 = vunpack.c.l.b16 %v262
  %v286 = vunpack.c.l.b16 %v263
  %v287 = vunpack.c.l.b16 %v264
  %v288 = vpack.c.b16 %v281, %v280
  %v289 = vpack.c.b16 %v283, %v282
  %v290 = vpack.c.b16 %v285, %v284
  %v291 = vpack.c.b16 %v287, %v286
  %v297 = vsel %vm195, %v255, 0
  %v300 = vsel %vm195, %v256, 0
  %302 = vmatprep.subr.bf16.mxu0 0
  %303 = vmatpush1.bf16.msra.mxu0 %v288
  %304 = vmatprep.subr.bf16.mxu0 0
  %305 = vmatpush1.bf16.msra.mxu0 %v289
  %306 = vmatprep.subr.bf16.mxu0 0
  %307 = vmatpush1.bf16.msra.mxu0 %v290
  %308 = vmatprep.subr.bf16.mxu0 0
  %309 = vmatpush1.bf16.msra.mxu0 %v291
  %310 = vmatprep.subr.bf16.mxu0 0
  %311 = vmatpush1.bf16.msra.mxu0 0
  %312 = vmatprep.subr.bf16.mxu0 0
  %313 = vmatpush1.bf16.msra.mxu0 0
  %314 = vmatprep.subr.bf16.mxu0 0
  %315 = vmatpush1.bf16.msra.mxu0 0
  %316 = vmatprep.subr.bf16.mxu0 0
  %317 = vmatpush1.bf16.msra.mxu0 0
  %318 = vmatprep.subr.bf16.mxu0 0
  %319 = vmatpush1.bf16.msra.mxu0 0
  %320 = vmatprep.subr.bf16.mxu0 0
  %321 = vmatpush1.bf16.msra.mxu0 0
  %322 = vmatprep.subr.bf16.mxu0 0
  %323 = vmatpush1.bf16.msra.mxu0 0
  %324 = vmatprep.subr.bf16.mxu0 0
  %325 = vmatpush1.bf16.msra.mxu0 0
  %326 = vmatprep.subr.bf16.mxu0 0
  %327 = vmatpush1.bf16.msra.mxu0 0
  %328 = vmatprep.subr.bf16.mxu0 0
  %329 = vmatpush1.bf16.msra.mxu0 0
  %330 = vmatprep.subr.bf16.mxu0 0
  %331 = vmatpush1.bf16.msra.mxu0 0
  %332 = vmatprep.subr.bf16.mxu0 0
  %333 = vmatpush1.bf16.msra.mxu0 0
  %334 = vmatprep.mubr.bf16.mxu0 0
  %335 = vmatmul.mubr.bf16.gmra.mrb[0].mxu0 %v297
  %v336 = vpop.f32.mrb[0].mxu0
  %v337 = vadd.f32 %v270, %v336
  %v338 = vpop.f32.mrb[0].mxu0
  %v339 = vpop.f32.mrb[0].mxu0
  %v340 = vadd.f32 %v270, %v339
  %v341 = vpop.f32.mrb[0].mxu0
  %342 = vmatprep.mubr.bf16.mxu0 0
  %343 = vmatmul.mubr.bf16.gmra.mrb[0].mxu0 %v300
  %v344 = vpop.f32.mrb[0].mxu0
  %v345 = vadd.f32 %v270, %v344
  %v346 = vpop.f32.mrb[0].mxu0
  %v347 = vpop.f32.mrb[0].mxu0
  %v348 = vadd.f32 %v270, %v347
  %v349 = vpop.f32.mrb[0].mxu0
  %350 = vdwg.mxu0
  %v351 = vmax.f32 %v337, 0.0
  %v352 = vmax.f32 %v340, 0.0
  %v353 = vmax.f32 %v345, 0.0
  %v354 = vmax.f32 %v348, 0.0
  %v355 = vpack.c.bf16 %v352, %v351
  %v356 = vpack.c.bf16 %v354, %v353
  %v357 = vld [vmem:[%s8] sm:$0xf]
  %v358 = vld [vmem:[%s8 + $0x4] sm:$0xf]
  %v359 = vld [vmem:[%s8 + $0x8] sm:$0xf]
  %v360 = vld [vmem:[%s8 + $0xc] sm:$0xf]
  %v361 = vld [vmem:[%s8 + $0x10] sm:$0xf]
  %v362 = vld [vmem:[%s8 + $0x14] sm:$0xf]
  %v363 = vld [vmem:[%s8 + $0x18] sm:$0xf]
  %v364 = vld [vmem:[%s8 + $0x1c] sm:$0xf]
  %v365 = vld [vmem:[%s9] sm:$0x1]
  %v367 = vlaneseq
  %v368 = vshrl.u32 %v367, 7
  %v369 = vsub.s32 0, %v368
  %v370 = vrot.slane %v365, %v369
  %v380 = vunpack.c.l.b16 %v357
  %v381 = vunpack.c.l.b16 %v358
  %v382 = vunpack.c.l.b16 %v359
  %v383 = vunpack.c.l.b16 %v360
  %v384 = vunpack.c.l.b16 %v361
  %v385 = vunpack.c.l.b16 %v362
  %v386 = vunpack.c.l.b16 %v363
  %v387 = vunpack.c.l.b16 %v364
  %v388 = vpack.c.b16 %v381, %v380
  %v389 = vpack.c.b16 %v383, %v382
  %v390 = vpack.c.b16 %v385, %v384
  %v391 = vpack.c.b16 %v387, %v386
  %v397 = vsel %vm195, %v355, 0
  %v400 = vsel %vm195, %v356, 0
  %402 = vmatprep.subr.bf16.mxu0 0
  %403 = vmatpush1.bf16.msra.mxu0 %v388
  %404 = vmatprep.subr.bf16.mxu0 0
  %405 = vmatpush1.bf16.msra.mxu0 %v389
  %406 = vmatprep.subr.bf16.mxu0 0
  %407 = vmatpush1.bf16.msra.mxu0 %v390
  %408 = vmatprep.subr.bf16.mxu0 0
  %409 = vmatpush1.bf16.msra.mxu0 %v391
  %410 = vmatprep.subr.bf16.mxu0 0
  %411 = vmatpush1.bf16.msra.mxu0 0
  %412 = vmatprep.subr.bf16.mxu0 0
  %413 = vmatpush1.bf16.msra.mxu0 0
  %414 = vmatprep.subr.bf16.mxu0 0
  %415 = vmatpush1.bf16.msra.mxu0 0
  %416 = vmatprep.subr.bf16.mxu0 0
  %417 = vmatpush1.bf16.msra.mxu0 0
  %418 = vmatprep.subr.bf16.mxu0 0
  %419 = vmatpush1.bf16.msra.mxu0 0
  %420 = vmatprep.subr.bf16.mxu0 0
  %421 = vmatpush1.bf16.msra.mxu0 0
  %422 = vmatprep.subr.bf16.mxu0 0
  %423 = vmatpush1.bf16.msra.mxu0 0
  %424 = vmatprep.subr.bf16.mxu0 0
  %425 = vmatpush1.bf16.msra.mxu0 0
  %426 = vmatprep.subr.bf16.mxu0 0
  %427 = vmatpush1.bf16.msra.mxu0 0
  %428 = vmatprep.subr.bf16.mxu0 0
  %429 = vmatpush1.bf16.msra.mxu0 0
  %430 = vmatprep.subr.bf16.mxu0 0
  %431 = vmatpush1.bf16.msra.mxu0 0
  %432 = vmatprep.subr.bf16.mxu0 0
  %433 = vmatpush1.bf16.msra.mxu0 0
  %434 = vmatprep.mubr.bf16.mxu0 0
  %435 = vmatmul.mubr.bf16.gmra.mrb[0].mxu0 %v397
  %v436 = vpop.f32.mrb[0].mxu0
  %v437 = vadd.f32 %v370, %v436
  %v438 = vpop.f32.mrb[0].mxu0
  %v439 = vpop.f32.mrb[0].mxu0
  %v440 = vadd.f32 %v370, %v439
  %v441 = vpop.f32.mrb[0].mxu0
  %442 = vmatprep.mubr.bf16.mxu0 0
  %443 = vmatmul.mubr.bf16.gmra.mrb[0].mxu0 %v400
  %v444 = vpop.f32.mrb[0].mxu0
  %v445 = vadd.f32 %v370, %v444
  %v446 = vpop.f32.mrb[0].mxu0
  %v447 = vpop.f32.mrb[0].mxu0
  %v448 = vadd.f32 %v370, %v447
  %v449 = vpop.f32.mrb[0].mxu0
  %450 = vdwg.mxu0
  %v451 = vmax.f32 %v437, 0.0
  %v452 = vmax.f32 %v440, 0.0
  %v453 = vmax.f32 %v445, 0.0
  %v454 = vmax.f32 %v448, 0.0
  %v455 = vpack.c.bf16 %v452, %v451
  %v456 = vpack.c.bf16 %v454, %v453
  %v457 = vld [vmem:[%s10] sm:$0xf]
  %v458 = vld [vmem:[%s10 + $0x4] sm:$0xf]
  %v459 = vld [vmem:[%s10 + $0x8] sm:$0xf]
  %v460 = vld [vmem:[%s10 + $0xc] sm:$0xf]
  %v461 = vld [vmem:[%s10 + $0x10] sm:$0xf]
  %v462 = vld [vmem:[%s10 + $0x14] sm:$0xf]
  %v463 = vld [vmem:[%s10 + $0x18] sm:$0xf]
  %v464 = vld [vmem:[%s10 + $0x1c] sm:$0xf]
  %v465 = vld [vmem:[%s11] sm:$0x1]
  %v467 = vlaneseq
  %v468 = vshrl.u32 %v467, 7
  %v469 = vsub.s32 0, %v468
  %v470 = vrot.slane %v465, %v469
  %v480 = vunpack.c.l.b16 %v457
  %v481 = vunpack.c.l.b16 %v458
  %v482 = vunpack.c.l.b16 %v459
  %v483 = vunpack.c.l.b16 %v460
  %v484 = vunpack.c.l.b16 %v461
  %v485 = vunpack.c.l.b16 %v462
  %v486 = vunpack.c.l.b16 %v463
  %v487 = vunpack.c.l.b16 %v464
  %v488 = vpack.c.b16 %v481, %v480
  %v489 = vpack.c.b16 %v483, %v482
  %v490 = vpack.c.b16 %v485, %v484
  %v491 = vpack.c.b16 %v487, %v486
  %v497 = vsel %vm195, %v455, 0
  %v500 = vsel %vm195, %v456, 0
  %502 = vmatprep.subr.bf16.mxu0 0
  %503 = vmatpush1.bf16.msra.mxu0 %v488
  %504 = vmatprep.subr.bf16.mxu0 0
  %505 = vmatpush1.bf16.msra.mxu0 %v489
  %506 = vmatprep.subr.bf16.mxu0 0
  %507 = vmatpush1.bf16.msra.mxu0 %v490
  %508 = vmatprep.subr.bf16.mxu0 0
  %509 = vmatpush1.bf16.msra.mxu0 %v491
  %510 = vmatprep.subr.bf16.mxu0 0
  %511 = vmatpush1.bf16.msra.mxu0 0
  %512 = vmatprep.subr.bf16.mxu0 0
  %513 = vmatpush1.bf16.msra.mxu0 0
  %514 = vmatprep.subr.bf16.mxu0 0
  %515 = vmatpush1.bf16.msra.mxu0 0
  %516 = vmatprep.subr.bf16.mxu0 0
  %517 = vmatpush1.bf16.msra.mxu0 0
  %518 = vmatprep.subr.bf16.mxu0 0
  %519 = vmatpush1.bf16.msra.mxu0 0
  %520 = vmatprep.subr.bf16.mxu0 0
  %521 = vmatpush1.bf16.msra.mxu0 0
  %522 = vmatprep.subr.bf16.mxu0 0
  %523 = vmatpush1.bf16.msra.mxu0 0
  %524 = vmatprep.subr.bf16.mxu0 0
  %525 = vmatpush1.bf16.msra.mxu0 0
  %526 = vmatprep.subr.bf16.mxu0 0
  %527 = vmatpush1.bf16.msra.mxu0 0
  %528 = vmatprep.subr.bf16.mxu0 0
  %529 = vmatpush1.bf16.msra.mxu0 0
  %530 = vmatprep.subr.bf16.mxu0 0
  %531 = vmatpush1.bf16.msra.mxu0 0
  %532 = vmatprep.subr.bf16.mxu0 0
  %533 = vmatpush1.bf16.msra.mxu0 0
  %534 = vmatprep.mubr.bf16.mxu0 0
  %535 = vmatmul.mubr.bf16.gmra.mrb[0].mxu0 %v497
  %v536 = vpop.f32.mrb[0].mxu0
  %v537 = vadd.f32 %v470, %v536
  %v538 = vpop.f32.mrb[0].mxu0
  %v539 = vpop.f32.mrb[0].mxu0
  %v540 = vadd.f32 %v470, %v539
  %v541 = vpop.f32.mrb[0].mxu0
  %542 = vmatprep.mubr.bf16.mxu0 0
  %543 = vmatmul.mubr.bf16.gmra.mrb[0].mxu0 %v500
  %v544 = vpop.f32.mrb[0].mxu0
  %v545 = vadd.f32 %v470, %v544
  %v546 = vpop.f32.mrb[0].mxu0
  %v547 = vpop.f32.mrb[0].mxu0
  %v548 = vadd.f32 %v470, %v547
  %v549 = vpop.f32.mrb[0].mxu0
  %550 = vdwg.mxu0
  %vm551 = vcmask 15360
  %552 = vst.msk [vmem:[%s12] sm:$0xff] %vm551, %v537
  %553 = vst.msk [vmem:[%s12 + $0x8] sm:$0xff] %vm551, %v540
  %554 = vst.msk [vmem:[%s12 + $0x10] sm:$0xff] %vm551, %v545
  %555 = vst.msk [vmem:[%s12 + $0x18] sm:$0xff] %vm551, %v548
  // Predicated region
  $region50: #{nn_forward.1} parent=0 // pred_check
    _
  $region51: #{nn_forward.1} parent=0 // pred_check_branch
    %557 = sbr.rel (0) target = $region53
  $region52: #{nn_forward.1} parent=0 // pred_region
    _
  $region53: #{nn_forward.1} parent=0 // pred_fallthru
    _
  // Predicated region
  $region54: #{nn_forward.1} parent=0 // pred_check
    _
  $region55: #{nn_forward.1} parent=0 // pred_check_branch
    %559 = sbr.rel (0) target = $region57
  $region56: #{nn_forward.1} parent=0 // pred_region
    _
  $region57: #{nn_forward.1} parent=0 // pred_fallthru
    _

</llo_original>
